<compile_context>
chip_gen: v6e
topology: v6e:2x2x1
jax: 0.10.0
libtpu: 0.0.40
codegen_flags: <defaults>
</compile_context>

<pallas_src>
import jax
import jax.numpy as jnp
from jax.experimental import pallas as pl
from jax.experimental.pallas import tpu as pltpu


def _sage_gcn_kernel(src_ref, neigh_ref, vals_ref, w_ref, out_ref):
    # src_ref:   [TB, D]           self features for TB nodes
    # neigh_ref: [TB, N*D]         node-major flattened neighbor features
    # vals_ref:  [TB, N]           neighbor scalar values
    # w_ref:     [(N+1)*D, 2H]     fused block weight (see wrapper)
    # out_ref:   [TB, P]           lane-dense slab; [:, :2H+1] is the real output
    lhs = jnp.concatenate([src_ref[...], neigh_ref[...]], axis=-1)  # [TB,(N+1)*D]

    # One fused MXU pass:
    #   hidden[:, :H]   = src @ W_self
    #   hidden[:, H:2H] = (sum_n neigh_n) @ (W_agg / N) = mean(neigh) @ W_agg
    hidden = jnp.dot(lhs, w_ref[...],
                     preferred_element_type=jnp.float32)            # [TB, 2H]

    # Scalar mean of neighbor values (minor-axis lane reduce).
    mean_val = jnp.mean(vals_ref[...], axis=-1, keepdims=True)       # [TB, 1]

    # Build the full lane-dense slab and store it once (unmasked writeback).
    tb, slab_w = out_ref.shape
    pad_w = slab_w - hidden.shape[1] - 1
    slab = jnp.concatenate(
        [hidden, mean_val.astype(jnp.float32),
         jnp.zeros((tb, pad_w), jnp.float32)], axis=-1)              # [TB, P]

    # ReLU is elementwise, so relu(per-piece) == relu(concat(...)).
    out_ref[...] = jnp.maximum(slab, 0.0).astype(out_ref.dtype)


def sage_gcn_forward_batched(src, neigh, vals, w_self, w_agg, *, tile_b=8):
    """Batched SageGCN forward.

    src:   [B, D]      neigh: [B, N, D]     vals: [B, N]
    w_self/w_agg: [D, H]        returns [B, 2H+1]

    tile_b rows are processed per grid step; use 128+ for real workloads
    (8 keeps the demo shapes small).
    """
    B, D = src.shape
    N = neigh.shape[1]
    H = w_self.shape[1]
    out_dim = 2 * H + 1
    slab_w = pl.cdiv(out_dim, 128) * 128          # lane-dense output width

    f32 = jnp.float32
    src = src.astype(f32)
    neigh = neigh.astype(f32)
    vals = vals.astype(f32)
    # TODO(synk): on v6e/v7x feed bf16 src/neigh/weights straight through (MXU
    # accumulates in f32 via preferred_element_type); kept f32 here to match
    # the f32 PyTorch reference numerics.

    # Fused weight, built once:  [(N+1)*D, 2H]
    #   rows [0:D]            -> W_self in cols [0:H]
    #   rows [D + n*D : ...]  -> W_agg / N in cols [H:2H]  (for every neighbor n)
    # so a single contraction performs both linears AND the neighbor mean.
    big_d = (N + 1) * D
    w_fused = jnp.zeros((big_d, 2 * H), dtype=f32)
    w_fused = w_fused.at[:D, :H].set(w_self.astype(f32))
    w_fused = w_fused.at[D:, H:].set(jnp.tile(w_agg.astype(f32) / N, (N, 1)))

    # Pad the batch up to a multiple of the sublane tile.
    b_pad = pl.cdiv(B, tile_b) * tile_b
    if b_pad != B:
        pad = b_pad - B
        src = jnp.pad(src, ((0, pad), (0, 0)))
        neigh = jnp.pad(neigh, ((0, pad), (0, 0), (0, 0)))
        vals = jnp.pad(vals, ((0, pad), (0, 0)))

    neigh_flat = neigh.reshape(b_pad, N * D)      # free row-major reshape

    out = pl.pallas_call(
        _sage_gcn_kernel,
        out_shape=jax.ShapeDtypeStruct((b_pad, slab_w), f32),
        grid_spec=pltpu.PrefetchScalarGridSpec(
            num_scalar_prefetch=0,
            grid=(b_pad // tile_b,),
            in_specs=[
                pl.BlockSpec((tile_b, D), lambda i: (i, 0)),
                pl.BlockSpec((tile_b, N * D), lambda i: (i, 0)),
                pl.BlockSpec((tile_b, N), lambda i: (i, 0)),
                pl.BlockSpec((big_d, 2 * H), lambda i: (0, 0)),  # resident weights
            ],
            out_specs=pl.BlockSpec((tile_b, slab_w), lambda i: (i, 0)),
        ),
        compiler_params=pltpu.CompilerParams(
            dimension_semantics=("parallel",)),   # batch axis -> both TCs on v7x
    )(src, neigh_flat, vals, w_fused)

    return out[:B, :out_dim]


def sage_gcn_forward(src, neigh, vals, w_self, w_agg):
    """Original module signature: src [D], neigh [N, D], vals [N] -> [2H+1]."""
    return sage_gcn_forward_batched(src[None], neigh[None], vals[None],
                                    w_self, w_agg)[0]


def _reference_single(src, neigh, vals, w_self, w_agg):
    neighbor_hidden = jnp.mean(neigh, axis=0) @ w_agg
    self_hidden = src @ w_self
    hidden = jnp.concatenate(
        [self_hidden, neighbor_hidden, jnp.mean(vals)[None]], axis=0)
    return jnp.maximum(hidden, 0.0)


if __name__ == "__main__":
    INPUT_DIM, HIDDEN_DIM, N_NEIGH, BATCH = 32, 16, 8, 16

    key = jax.random.PRNGKey(0)
    k1, k2, k3, k4, k5 = jax.random.split(key, 5)

    # Deterministic kaiming-uniform-like parameter init (bound = sqrt(6/fan_in)).
    bound = (6.0 / INPUT_DIM) ** 0.5
    w_self = jax.random.uniform(k1, (INPUT_DIM, HIDDEN_DIM),
                                minval=-bound, maxval=bound, dtype=jnp.float32)
    w_agg = jax.random.uniform(k2, (INPUT_DIM, HIDDEN_DIM),
                               minval=-bound, maxval=bound, dtype=jnp.float32)

    src = jax.random.normal(k3, (BATCH, INPUT_DIM), dtype=jnp.float32)
    neigh = jax.random.normal(k4, (BATCH, N_NEIGH, INPUT_DIM), dtype=jnp.float32)
    vals = jax.random.normal(k5, (BATCH, N_NEIGH), dtype=jnp.float32)

    # Batched path (one pallas_call for all nodes).
    out = jax.block_until_ready(
        sage_gcn_forward_batched(src, neigh, vals, w_self, w_agg))
    ref = jax.vmap(_reference_single, in_axes=(0, 0, 0, None, None))(
        src, neigh, vals, w_self, w_agg)
    assert out.shape == (BATCH, 2 * HIDDEN_DIM + 1)
    assert jnp.allclose(out, ref, atol=3e-5, rtol=1e-5), \
        float(jnp.max(jnp.abs(out - ref)))

    # Single-node path (exact original module signature).
    out1 = jax.block_until_ready(
        sage_gcn_forward(src[0], neigh[0], vals[0], w_self, w_agg))
    ref1 = _reference_single(src[0], neigh[0], vals[0], w_self, w_agg)
    assert out1.shape == (2 * HIDDEN_DIM + 1,)
    assert jnp.allclose(out1, ref1, atol=3e-5, rtol=1e-5)

    print("KERNEL_OK")
</pallas_src>

<mosaic_0001>
module attributes {stable_mosaic.version = 11 : i64} {
  func.func @_sage_gcn_kernel(%arg0: i32, %arg1: memref<8x32xf32, #tpu.memory_space<vmem>>, %arg2: memref<8x256xf32, #tpu.memory_space<vmem>>, %arg3: memref<8x8xf32, #tpu.memory_space<vmem>>, %arg4: memref<288x32xf32, #tpu.memory_space<vmem>>, %arg5: memref<8x128xf32, #tpu.memory_space<vmem>>) attributes {dimension_semantics = [#tpu.dimension_semantics<parallel>], iteration_bounds = array<i64: 2>, scalar_prefetch = 0 : i64, scratch_operands = 0 : i64, tpu.core_type = #tpu.core_type<tc>, window_params = [{transform_indices = @transform_0, window_bounds = array<i64: 8, 32>}, {transform_indices = @transform_1, window_bounds = array<i64: 8, 256>}, {transform_indices = @transform_2, window_bounds = array<i64: 8, 8>}, {pipeline_mode = #tpu.pipeline_mode<synchronous>, transform_indices = @transform_3, window_bounds = array<i64: 288, 32>}, {transform_indices = @transform_4, window_bounds = array<i64: 8, 128>}]} {
    %c0 = arith.constant 0 : index
    %c0_0 = arith.constant 0 : index
    %0 = vector.load %arg1[%c0, %c0_0] : memref<8x32xf32, #tpu.memory_space<vmem>>, vector<8x32xf32>
    %c0_1 = arith.constant 0 : index
    %c0_2 = arith.constant 0 : index
    %1 = vector.load %arg2[%c0_1, %c0_2] : memref<8x256xf32, #tpu.memory_space<vmem>>, vector<8x256xf32>
    %2 = tpu.concatenate %0, %1 in 1 : vector<8x32xf32>, vector<8x256xf32> -> vector<8x288xf32>
    %c0_3 = arith.constant 0 : index
    %c0_4 = arith.constant 0 : index
    %3 = vector.load %arg4[%c0_3, %c0_4] : memref<288x32xf32, #tpu.memory_space<vmem>>, vector<288x32xf32>
    %cst = arith.constant dense<0.000000e+00> : vector<8x32xf32>
    %4 = tpu.matmul %2, %3, %cst {dimension_numbers = #tpu.dot_dimension_numbers<[1], [0], [0], [1], [0, 0, 1, 1], [], []>} : vector<8x288xf32>, vector<288x32xf32>, vector<8x32xf32> -> vector<8x32xf32>
    %c0_5 = arith.constant 0 : index
    %c0_6 = arith.constant 0 : index
    %5 = vector.load %arg3[%c0_5, %c0_6] : memref<8x8xf32, #tpu.memory_space<vmem>>, vector<8x8xf32>
    %cst_7 = arith.constant dense<0.000000e+00> : vector<8xf32>
    %6 = vector.multi_reduction <add>, %5, %cst_7 [1] : vector<8x8xf32> to vector<8xf32>
    %7 = vector.shape_cast %6 : vector<8xf32> to vector<8x1xf32>
    %cst_8 = arith.constant 8.000000e+00 : f32
    %8 = vector.broadcast %cst_8 : f32 to vector<8x1xf32>
    %9 = arith.divf %7, %8 : vector<8x1xf32>
    %cst_9 = arith.constant 0.000000e+00 : f32
    %10 = vector.broadcast %cst_9 : f32 to vector<8x95xf32>
    %11 = tpu.concatenate %4, %9, %10 in 1 : vector<8x32xf32>, vector<8x1xf32>, vector<8x95xf32> -> vector<8x128xf32>
    %cst_10 = arith.constant 0.000000e+00 : f32
    %12 = vector.broadcast %cst_10 : f32 to vector<8x128xf32>
    %13 = arith.maximumf %11, %12 : vector<8x128xf32>
    %c0_11 = arith.constant 0 : index
    %c0_12 = arith.constant 0 : index
    %14 = vector.load %arg5[%c0_11, %c0_12] : memref<8x128xf32, #tpu.memory_space<vmem>>, vector<8x128xf32>
    tpu.vector_store %arg5[%c0_11, %c0_12], %13 {strides = array<i32>} : memref<8x128xf32, #tpu.memory_space<vmem>>, vector<8x128xf32>,
    return
  }
  func.func @transform_0(%arg0: i32) -> (i32, i32) {
    %c0_i32 = arith.constant 0 : i32
    %c0_i32_0 = arith.constant 0 : i32
    return %arg0, %c0_i32 : i32, i32
  }
  func.func @transform_1(%arg0: i32) -> (i32, i32) {
    %c0_i32 = arith.constant 0 : i32
    %c0_i32_0 = arith.constant 0 : i32
    return %arg0, %c0_i32 : i32, i32
  }
  func.func @transform_2(%arg0: i32) -> (i32, i32) {
    %c0_i32 = arith.constant 0 : i32
    %c0_i32_0 = arith.constant 0 : i32
    return %arg0, %c0_i32 : i32, i32
  }
  func.func @transform_3(%arg0: i32) -> (i32, i32) {
    %c0_i32 = arith.constant 0 : i32
    %c0_i32_0 = arith.constant 0 : i32
    %c0_i32_1 = arith.constant 0 : i32
    return %c0_i32, %c0_i32_0 : i32, i32
  }
  func.func @transform_4(%arg0: i32) -> (i32, i32) {
    %c0_i32 = arith.constant 0 : i32
    %c0_i32_0 = arith.constant 0 : i32
    return %arg0, %c0_i32 : i32, i32
  }
}

</mosaic_0001>

<llo_original>
// kernel: tpu_custom_call.1
$region0: #{tpu_custom_call.1}
  #allocation0 [shape = 'u32[]', space=smem, size = 0x4, offset = 0x4, fixed_abs, tag = 'smem constant byte address 0x4 - core index']
  #allocation1 [shape = 'u32[144,128]{1,0:T(1,128)}', space=vmem, size = 0x12000, scoped, tag = 'internal scratch']
  %s0 = inlined_call_operand.vmem [shape: f32[16,32], index: 0, kind: input, shape index: {}]
  %s1 = inlined_call_operand.vmem [shape: f32[16,256], index: 1, kind: input, shape index: {}]
  %s2 = inlined_call_operand.vmem [shape: f32[16,8], index: 2, kind: input, shape index: {}]
  %s3 = inlined_call_operand.vmem [shape: f32[288,32], index: 3, kind: input, shape index: {}]
  %s4 = inlined_call_operand.hbm [shape: f32[16,128], index: 4, kind: output, shape index: {}]
  %s5 = sld [smem:[#allocation0]]
  $region49: #{tpu_custom_call.1} parent=0
    _
  %s7 = ssub.s32 1, %s5
  %s8 = scalar_select 0, %s7, %s5
  $region1: #{tpu_custom_call.1} parent=0
    #allocation2 [shape = 'u8[8192]{0}', space=vmem, size = 0x2000, scoped, tag = 'output window, operand 0']
    #allocation3 [shape = 's32[2]{0}', space=sflag, size = 0x8, scoped, tag = 'scoped memory for tpu_custom_call.1']
    %9 = vsyncpa [#allocation3], 0
    %s10 = scalar_lea.sflag [#allocation3], 1
    %11 = vsyncpa %s10, 0
    loop: start=0, step=1, limit=4
    $region2: #{tpu_custom_call.1} parent=1 // loop_pre_header
      _
    $region3: #{tpu_custom_call.1} parent=1 // loop_header
      %s13 = sphi 0, %s17
      %p14 = scmp.ge.s32.totalorder %s13, 4
      %s23 = sphi 0, %s25
      %s26 = sphi 0, %s23
      %s27 = sphi 0, %s26
      %s43 = sphi 0, %s27
      %s49 = sphi 0, %s51
      %s52 = sphi 0, %s49
      %s53 = sphi 0, %s52
      %s69 = sphi 0, %s53
      %s75 = sphi 0, %s77
      %s78 = sphi 0, %s75
      %s79 = sphi 0, %s78
      %s95 = sphi 0, %s79
      %s99 = sphi 0, %s99
      %s101 = sphi 0, %s99
      %s102 = sphi 0, %s101
      %s116 = sphi 0, %s102
      %s122 = sphi 0, %s124
      %s125 = sphi 0, %s122
      %s126 = sphi 0, %s125
      %s142 = sphi 0, %s126
    $region4: #{tpu_custom_call.1} parent=1 // loop_header_branch
      %16 = sbr.rel (%p14) target = $region8
    $region5: #{tpu_custom_call.1} parent=1 // loop_body
      %s18 = ssub.s32 %s13, 1
      %s19 = ssub.s32 %s13, 2
      %s20 = sadd.s32 %s13, 1
      %s21 = ssub.s32 %s13, %s20
      %p22 = scmp.eq.s32.totalorder %s21, 0
      %s24 = sadd.s32 %s23, 1
      %s25 = scalar_select %p22, %s23, %s24
      %p28 = pneg %p22
      %p29 = scmp.eq.s32.totalorder %s13, 1
      %p30 = por %p28, %p29
      %p31 = scmp.ne.s32.totalorder %s23, %s26
      %p32 = scmp.eq.s32.totalorder %s13, 0
      %p33 = por %p31, %p32
      %p34 = scmp.ne.s32.totalorder %s23, %s26
      %p35 = scmp.eq.s32.totalorder %s18, 1
      %p36 = por %p34, %p35
      %p37 = scmp.ne.s32.totalorder %s26, %s27
      %p38 = scmp.eq.s32.totalorder %s18, 0
      %p39 = por %p37, %p38
      %p40 = scmp.ne.s32.totalorder %s26, %s27
      %p41 = scmp.eq.s32.totalorder %s19, 1
      %p42 = por %p40, %p41
      %p44 = scmp.ne.s32.totalorder %s27, %s43
      %p45 = scmp.eq.s32.totalorder %s19, 0
      %p46 = por %p44, %p45
      %s47 = ssub.s32 %s13, %s20
      %p48 = scmp.eq.s32.totalorder %s47, 0
      %s50 = sadd.s32 %s49, 1
      %s51 = scalar_select %p48, %s49, %s50
      %p54 = pneg %p48
      %p55 = scmp.eq.s32.totalorder %s13, 1
      %p56 = por %p54, %p55
      %p57 = scmp.ne.s32.totalorder %s49, %s52
      %p58 = scmp.eq.s32.totalorder %s13, 0
      %p59 = por %p57, %p58
      %p60 = scmp.ne.s32.totalorder %s49, %s52
      %p61 = scmp.eq.s32.totalorder %s18, 1
      %p62 = por %p60, %p61
      %p63 = scmp.ne.s32.totalorder %s52, %s53
      %p64 = scmp.eq.s32.totalorder %s18, 0
      %p65 = por %p63, %p64
      %p66 = scmp.ne.s32.totalorder %s52, %s53
      %p67 = scmp.eq.s32.totalorder %s19, 1
      %p68 = por %p66, %p67
      %p70 = scmp.ne.s32.totalorder %s53, %s69
      %p71 = scmp.eq.s32.totalorder %s19, 0
      %p72 = por %p70, %p71
      %s73 = ssub.s32 %s13, %s20
      %p74 = scmp.eq.s32.totalorder %s73, 0
      %s76 = sadd.s32 %s75, 1
      %s77 = scalar_select %p74, %s75, %s76
      %p80 = pneg %p74
      %p81 = scmp.eq.s32.totalorder %s13, 1
      %p82 = por %p80, %p81
      %p83 = scmp.ne.s32.totalorder %s75, %s78
      %p84 = scmp.eq.s32.totalorder %s13, 0
      %p85 = por %p83, %p84
      %p86 = scmp.ne.s32.totalorder %s75, %s78
      %p87 = scmp.eq.s32.totalorder %s18, 1
      %p88 = por %p86, %p87
      %p89 = scmp.ne.s32.totalorder %s78, %s79
      %p90 = scmp.eq.s32.totalorder %s18, 0
      %p91 = por %p89, %p90
      %p92 = scmp.ne.s32.totalorder %s78, %s79
      %p93 = scmp.eq.s32.totalorder %s19, 1
      %p94 = por %p92, %p93
      %p96 = scmp.ne.s32.totalorder %s79, %s95
      %p97 = scmp.eq.s32.totalorder %s19, 0
      %p98 = por %p96, %p97
      %s100 = sadd.s32 %s99, 1
      %p103 = scmp.eq.s32.totalorder %s13, 1
      %p104 = scmp.ne.s32.totalorder %s99, %s101
      %p105 = scmp.eq.s32.totalorder %s13, 0
      %p106 = por %p104, %p105
      %p107 = scmp.ne.s32.totalorder %s99, %s101
      %p108 = scmp.eq.s32.totalorder %s18, 1
      %p109 = por %p107, %p108
      %p110 = scmp.ne.s32.totalorder %s101, %s102
      %p111 = scmp.eq.s32.totalorder %s18, 0
      %p112 = por %p110, %p111
      %p113 = scmp.ne.s32.totalorder %s101, %s102
      %p114 = scmp.eq.s32.totalorder %s19, 1
      %p115 = por %p113, %p114
      %p117 = scmp.ne.s32.totalorder %s102, %s116
      %p118 = scmp.eq.s32.totalorder %s19, 0
      %p119 = por %p117, %p118
      %s120 = ssub.s32 %s13, %s20
      %p121 = scmp.eq.s32.totalorder %s120, 0
      %s123 = sadd.s32 %s122, 1
      %s124 = scalar_select %p121, %s122, %s123
      %p127 = pneg %p121
      %p128 = scmp.eq.s32.totalorder %s13, 1
      %p129 = por %p127, %p128
      %p130 = scmp.ne.s32.totalorder %s122, %s125
      %p131 = scmp.eq.s32.totalorder %s13, 0
      %p132 = por %p130, %p131
      %p133 = scmp.ne.s32.totalorder %s122, %s125
      %p134 = scmp.eq.s32.totalorder %s18, 1
      %p135 = por %p133, %p134
      %p136 = scmp.ne.s32.totalorder %s125, %s126
      %p137 = scmp.eq.s32.totalorder %s18, 0
      %p138 = por %p136, %p137
      %p139 = scmp.ne.s32.totalorder %s125, %s126
      %p140 = scmp.eq.s32.totalorder %s19, 1
      %p141 = por %p139, %p140
      %p143 = scmp.ne.s32.totalorder %s126, %s142
      %p144 = scmp.eq.s32.totalorder %s19, 0
      %p145 = por %p143, %p144
      %p146 = scmp.le.s32.totalorder 1, %s13
      %p147 = scmp.lt.s32.totalorder %s13, 3
      %p148 = pnand %p146, %p147
      %p149 = pneg %p148
      // Predicated region
      $region9: #{tpu_custom_call.1} parent=5 // pred_check
        _
      $region10: #{tpu_custom_call.1} parent=5 // pred_check_branch
        %151 = sbr.rel (%p148) target = $region12
      $region11: #{tpu_custom_call.1} parent=5 // pred_region
        %s152 = ssub.s32 %s13, 1
        // Predicated region
        $region13: #{tpu_custom_call.1} parent=11 // pred_check
          %p153 = pneg %p112
        $region14: #{tpu_custom_call.1} parent=11 // pred_check_branch
          %155 = sbr.rel (%p153) target = $region16
        $region15: #{tpu_custom_call.1} parent=11 // pred_region
          _
        $region16: #{tpu_custom_call.1} parent=11 // pred_fallthru
          _
      $region12: #{tpu_custom_call.1} parent=5 // pred_fallthru
        _
      %p156 = scmp.lt.s32.totalorder %s13, 2
      // Predicated region
      $region17: #{tpu_custom_call.1} parent=5 // pred_check
        %p157 = pneg %p156
      $region18: #{tpu_custom_call.1} parent=5 // pred_check_branch
        %159 = sbr.rel (%p157) target = $region20
      $region19: #{tpu_custom_call.1} parent=5 // pred_region
        // Predicated region
        $region21: #{tpu_custom_call.1} parent=19 // pred_check
          %p160 = pneg %p33
        $region22: #{tpu_custom_call.1} parent=19 // pred_check_branch
          %162 = sbr.rel (%p160) target = $region24
        $region23: #{tpu_custom_call.1} parent=19 // pred_region
          %p163 = scmp.lt.s32.totalorder %s13, 1
          %s164 = scalar_select %p163, %s13, 1
          %s165 = smul.addr %s164, 8
          %s166 = scalar_lea.vmem %s0, %s165
        $region24: #{tpu_custom_call.1} parent=19 // pred_fallthru
          _
        // Predicated region
        $region25: #{tpu_custom_call.1} parent=19 // pred_check
          %p167 = pneg %p59
        $region26: #{tpu_custom_call.1} parent=19 // pred_check_branch
          %169 = sbr.rel (%p167) target = $region28
        $region27: #{tpu_custom_call.1} parent=19 // pred_region
          %p170 = scmp.lt.s32.totalorder %s13, 1
          %s171 = scalar_select %p170, %s13, 1
          %s172 = smul.addr %s171, 2
          %s173 = smul.addr %s172, 8
          %s174 = scalar_lea.vmem %s1, %s173
        $region28: #{tpu_custom_call.1} parent=19 // pred_fallthru
          _
        // Predicated region
        $region29: #{tpu_custom_call.1} parent=19 // pred_check
          %p175 = pneg %p85
        $region30: #{tpu_custom_call.1} parent=19 // pred_check_branch
          %177 = sbr.rel (%p175) target = $region32
        $region31: #{tpu_custom_call.1} parent=19 // pred_region
          %p178 = scmp.lt.s32.totalorder %s13, 1
          %s179 = scalar_select %p178, %s13, 1
          %s180 = smul.addr %s179, 8
          %s181 = scalar_lea.vmem %s2, %s180
        $region32: #{tpu_custom_call.1} parent=19 // pred_fallthru
          _
      $region20: #{tpu_custom_call.1} parent=5 // pred_fallthru
        _
      %p182 = scmp.le.s32.totalorder 1, %s13
      %p183 = scmp.lt.s32.totalorder %s13, 3
      %p184 = pnand %p182, %p183
      %p185 = pneg %p184
      // Predicated region
      $region33: #{tpu_custom_call.1} parent=5 // pred_check
        _
      $region34: #{tpu_custom_call.1} parent=5 // pred_check_branch
        %187 = sbr.rel (%p184) target = $region36
      $region35: #{tpu_custom_call.1} parent=5 // pred_region
        %s188 = ssub.s32 %s13, 1
        %p189 = scmp.lt.s32.totalorder %s18, 1
        %s190 = scalar_select %p189, %s18, 1
        %s191 = smul.addr %s190, 8
        %s192 = scalar_lea.vmem %s0, %s191
        %p193 = pneg %p39
        %p194 = pneg %p36
        %p195 = scmp.lt.s32.totalorder %s18, 1
        %s196 = scalar_select %p195, %s18, 1
        %s197 = smul.addr %s196, 2
        %s198 = smul.addr %s197, 8
        %s199 = scalar_lea.vmem %s1, %s198
        %p200 = pneg %p65
        %p201 = pneg %p62
        %p202 = scmp.lt.s32.totalorder %s18, 1
        %s203 = scalar_select %p202, %s18, 1
        %s204 = smul.addr %s203, 8
        %s205 = scalar_lea.vmem %s2, %s204
        %p206 = pneg %p91
        %p207 = pneg %p88
        %p208 = pneg %p112
        %p209 = pneg %p109
        %p210 = pneg %p138
        %p211 = pneg %p135
        %s212 = sand.u32 %s125, 1
        %s213 = scalar_lea.sflag [#allocation3], %s212
        %s214 = sand.u32 %s125, 1
        %s215 = smul.addr %s214, 8
        %s216 = scalar_lea.vmem [#allocation2], %s215
        %p217 = scmp.lt.s32.totalorder %s18, 1
        %s218 = scalar_select %p217, %s18, 1
        %s219 = smul.addr %s218, 8
        %s220 = scalar_lea.vmem %s0, %s219
        %p221 = scmp.lt.s32.totalorder %s18, 1
        %s222 = scalar_select %p221, %s18, 1
        %s223 = smul.addr %s222, 2
        %s224 = smul.addr %s223, 8
        %s225 = scalar_lea.vmem %s1, %s224
        %p226 = scmp.lt.s32.totalorder %s18, 1
        %s227 = scalar_select %p226, %s18, 1
        %s228 = smul.addr %s227, 8
        %s229 = scalar_lea.vmem %s2, %s228
        %v230 = vld [vmem:[%s220] sm:$0xff]
        %v231 = vld [vmem:[%s225] sm:$0xff]
        %v232 = vld [vmem:[%s225 + $0x8] sm:$0xff]
        %235 = vrot.lane.b32.xlu0 %v231, 32
        %v236 = vpop.permute.xlu0 %235
        %237 = vrot.lane.b32.xlu0 %v232, 32
        %v238 = vpop.permute.xlu0 %237
        %vm239 = vcmask 261120
        %v240 = vsel %vm239, %v236, %v238
        %v243 = vsel %vm239, %v230, %v236
        %v244 = vld [vmem:[%s3] sm:$0xff]
        %v245 = vld [vmem:[%s3 + $0x8] sm:$0xff]
        %v246 = vld [vmem:[%s3 + $0x10] sm:$0xff]
        %v247 = vld [vmem:[%s3 + $0x18] sm:$0xff]
        %v248 = vld [vmem:[%s3 + $0x20] sm:$0xff]
        %v249 = vld [vmem:[%s3 + $0x28] sm:$0xff]
        %v250 = vld [vmem:[%s3 + $0x30] sm:$0xff]
        %v251 = vld [vmem:[%s3 + $0x38] sm:$0xff]
        %v252 = vld [vmem:[%s3 + $0x40] sm:$0xff]
        %v253 = vld [vmem:[%s3 + $0x48] sm:$0xff]
        %v254 = vld [vmem:[%s3 + $0x50] sm:$0xff]
        %v255 = vld [vmem:[%s3 + $0x58] sm:$0xff]
        %v256 = vld [vmem:[%s3 + $0x60] sm:$0xff]
        %v257 = vld [vmem:[%s3 + $0x68] sm:$0xff]
        %v258 = vld [vmem:[%s3 + $0x70] sm:$0xff]
        %v259 = vld [vmem:[%s3 + $0x78] sm:$0xff]
        %v260 = vld [vmem:[%s3 + $0x80] sm:$0xff]
        %v261 = vld [vmem:[%s3 + $0x88] sm:$0xff]
        %v262 = vld [vmem:[%s3 + $0x90] sm:$0xff]
        %v263 = vld [vmem:[%s3 + $0x98] sm:$0xff]
        %v264 = vld [vmem:[%s3 + $0xa0] sm:$0xff]
        %v265 = vld [vmem:[%s3 + $0xa8] sm:$0xff]
        %v266 = vld [vmem:[%s3 + $0xb0] sm:$0xff]
        %v267 = vld [vmem:[%s3 + $0xb8] sm:$0xff]
        %v268 = vld [vmem:[%s3 + $0xc0] sm:$0xff]
        %v269 = vld [vmem:[%s3 + $0xc8] sm:$0xff]
        %v270 = vld [vmem:[%s3 + $0xd0] sm:$0xff]
        %v271 = vld [vmem:[%s3 + $0xd8] sm:$0xff]
        %v272 = vld [vmem:[%s3 + $0xe0] sm:$0xff]
        %v273 = vld [vmem:[%s3 + $0xe8] sm:$0xff]
        %v274 = vld [vmem:[%s3 + $0xf0] sm:$0xff]
        %v275 = vld [vmem:[%s3 + $0xf8] sm:$0xff]
        %v276 = vld [vmem:[%s3 + $0x100] sm:$0xff]
        %v277 = vld [vmem:[%s3 + $0x108] sm:$0xff]
        %v278 = vld [vmem:[%s3 + $0x110] sm:$0xff]
        %v279 = vld [vmem:[%s3 + $0x118] sm:$0xff]
        %v280 = vsel %vm239, %v238, 0
        %282 = vmatprep.subr.mxu0 0.0
        %283 = vmatpush1.msra.mxu0 %v259
        %284 = vmatprep.subr.mxu0 0.0
        %285 = vmatpush1.msra.mxu0 %v258
        %286 = vmatprep.subr.mxu0 0.0
        %287 = vmatpush1.msra.mxu0 %v257
        %288 = vmatprep.subr.mxu0 0.0
        %289 = vmatpush1.msra.mxu0 %v256
        %290 = vmatprep.subr.mxu0 0.0
        %291 = vmatpush1.msra.mxu0 %v255
        %292 = vmatprep.subr.mxu0 0.0
        %293 = vmatpush1.msra.mxu0 %v254
        %294 = vmatprep.subr.mxu0 0.0
        %295 = vmatpush1.msra.mxu0 %v253
        %296 = vmatprep.subr.mxu0 0.0
        %297 = vmatpush1.msra.mxu0 %v252
        %298 = vmatprep.subr.mxu0 0.0
        %299 = vmatpush1.msra.mxu0 %v251
        %300 = vmatprep.subr.mxu0 0.0
        %301 = vmatpush1.msra.mxu0 %v250
        %302 = vmatprep.subr.mxu0 0.0
        %303 = vmatpush1.msra.mxu0 %v249
        %304 = vmatprep.subr.mxu0 0.0
        %305 = vmatpush1.msra.mxu0 %v248
        %306 = vmatprep.subr.mxu0 0.0
        %307 = vmatpush1.msra.mxu0 %v247
        %308 = vmatprep.subr.mxu0 0.0
        %309 = vmatpush1.msra.mxu0 %v246
        %310 = vmatprep.subr.mxu0 0.0
        %311 = vmatpush1.msra.mxu0 %v245
        %312 = vmatprep.subr.mxu0 0.0
        %313 = vmatpush1.msra.mxu0 %v244
        %314 = vmatprep.subr.mxu0 0.0
        %315 = vmatpush2.msra.mxu0 %v275
        %316 = vmatprep.subr.mxu0 0.0
        %317 = vmatpush2.msra.mxu0 %v274
        %318 = vmatprep.subr.mxu0 0.0
        %319 = vmatpush2.msra.mxu0 %v273
        %320 = vmatprep.subr.mxu0 0.0
        %321 = vmatpush2.msra.mxu0 %v272
        %322 = vmatprep.subr.mxu0 0.0
        %323 = vmatpush2.msra.mxu0 %v271
        %324 = vmatprep.subr.mxu0 0.0
        %325 = vmatpush2.msra.mxu0 %v270
        %326 = vmatprep.subr.mxu0 0.0
        %327 = vmatpush2.msra.mxu0 %v269
        %328 = vmatprep.subr.mxu0 0.0
        %329 = vmatpush2.msra.mxu0 %v268
        %330 = vmatprep.subr.mxu0 0.0
        %331 = vmatpush2.msra.mxu0 %v267
        %332 = vmatprep.subr.mxu0 0.0
        %333 = vmatpush2.msra.mxu0 %v266
        %334 = vmatprep.subr.mxu0 0.0
        %335 = vmatpush2.msra.mxu0 %v265
        %336 = vmatprep.subr.mxu0 0.0
        %337 = vmatpush2.msra.mxu0 %v264
        %338 = vmatprep.subr.mxu0 0.0
        %339 = vmatpush2.msra.mxu0 %v263
        %340 = vmatprep.subr.mxu0 0.0
        %341 = vmatpush2.msra.mxu0 %v262
        %342 = vmatprep.subr.mxu0 0.0
        %343 = vmatpush2.msra.mxu0 %v261
        %344 = vmatprep.subr.mxu0 0.0
        %345 = vmatpush2.msra.mxu0 %v260
        %346 = vmatprep.mubr.f32.mxu0 %v240
        %347 = vmatmul.mubr.f32.gmra.mxu0 %v243
        %v348 = vpop.f32.mrf.mxu0
        %v349 = vadd.f32 0.0, %v348
        %v350 = vpop.f32.mrf.mxu0
        %351 = vdwg.mxu0
        %352 = vmatprep.subr.mxu0 0.0
        %353 = vmatpush1.msra.mxu0 0.0
        %354 = vmatprep.subr.mxu0 0.0
        %355 = vmatpush1.msra.mxu0 0.0
        %356 = vmatprep.subr.mxu0 0.0
        %357 = vmatpush1.msra.mxu0 0.0
        %358 = vmatprep.subr.mxu0 0.0
        %359 = vmatpush1.msra.mxu0 0.0
        %360 = vmatprep.subr.mxu0 0.0
        %361 = vmatpush1.msra.mxu0 0.0
        %362 = vmatprep.subr.mxu0 0.0
        %363 = vmatpush1.msra.mxu0 0.0
        %364 = vmatprep.subr.mxu0 0.0
        %365 = vmatpush1.msra.mxu0 0.0
        %366 = vmatprep.subr.mxu0 0.0
        %367 = vmatpush1.msra.mxu0 0.0
        %368 = vmatprep.subr.mxu0 0.0
        %369 = vmatpush1.msra.mxu0 0.0
        %370 = vmatprep.subr.mxu0 0.0
        %371 = vmatpush1.msra.mxu0 0.0
        %372 = vmatprep.subr.mxu0 0.0
        %373 = vmatpush1.msra.mxu0 0.0
        %374 = vmatprep.subr.mxu0 0.0
        %375 = vmatpush1.msra.mxu0 0.0
        %376 = vmatprep.subr.mxu0 0.0
        %377 = vmatpush1.msra.mxu0 %v279
        %378 = vmatprep.subr.mxu0 0.0
        %379 = vmatpush1.msra.mxu0 %v278
        %380 = vmatprep.subr.mxu0 0.0
        %381 = vmatpush1.msra.mxu0 %v277
        %382 = vmatprep.subr.mxu0 0.0
        %383 = vmatpush1.msra.mxu0 %v276
        %384 = vmatprep.subr.mxu0 0.0
        %385 = vmatpush2.msra.mxu0 0.0
        %386 = vmatprep.subr.mxu0 0.0
        %387 = vmatpush2.msra.mxu0 0.0
        %388 = vmatprep.subr.mxu0 0.0
        %389 = vmatpush2.msra.mxu0 0.0
        %390 = vmatprep.subr.mxu0 0.0
        %391 = vmatpush2.msra.mxu0 0.0
        %392 = vmatprep.subr.mxu0 0.0
        %393 = vmatpush2.msra.mxu0 0.0
        %394 = vmatprep.subr.mxu0 0.0
        %395 = vmatpush2.msra.mxu0 0.0
        %396 = vmatprep.subr.mxu0 0.0
        %397 = vmatpush2.msra.mxu0 0.0
        %398 = vmatprep.subr.mxu0 0.0
        %399 = vmatpush2.msra.mxu0 0.0
        %400 = vmatprep.subr.mxu0 0.0
        %401 = vmatpush2.msra.mxu0 0.0
        %402 = vmatprep.subr.mxu0 0.0
        %403 = vmatpush2.msra.mxu0 0.0
        %404 = vmatprep.subr.mxu0 0.0
        %405 = vmatpush2.msra.mxu0 0.0
        %406 = vmatprep.subr.mxu0 0.0
        %407 = vmatpush2.msra.mxu0 0.0
        %408 = vmatprep.subr.mxu0 0.0
        %409 = vmatpush2.msra.mxu0 0.0
        %410 = vmatprep.subr.mxu0 0.0
        %411 = vmatpush2.msra.mxu0 0.0
        %412 = vmatprep.subr.mxu0 0.0
        %413 = vmatpush2.msra.mxu0 0.0
        %414 = vmatprep.subr.mxu0 0.0
        %415 = vmatpush2.msra.mxu0 0.0
        %416 = vmatprep.mubr.f32.mxu0 0.0
        %417 = vmatmul.mubr.f32.gmra.mxu0 %v280
        %v418 = vpop.f32.mrf.mxu0
        %v419 = vadd.f32 %v349, %v418
        %v420 = vpop.f32.mrf.mxu0
        %421 = vdwg.mxu0
        %v422 = vld [vmem:[%s229] sm:$0xff]
        %vm423 = vcmask 64512
        %v424 = vsel %vm423, %v422, 0.0
        %425 = vadd.xlane.f32.xlu0 %v424
        %v426 = vpop.xlane.xlu0 %425
        %v427 = vrcp.pop 8.0
        %v428 = vmul.f32 %v426, %v427
        %v429 = vsel %vm239, %v419, %v428
        %vm430 = vcmask 269312
        %v431 = vsel %vm430, %v429, 0.0
        %v432 = vmax.f32 %v431, 0.0
        %433 = vst [vmem:[%s216] sm:$0xff] %v432
        %s434 = sand.u32 %s125, 1
        %s435 = scalar_lea.sflag [#allocation3], %s434
        %s436 = sand.u32 %s125, 1
        %s437 = smul.addr %s436, 8
        %s438 = scalar_lea.vmem [#allocation2], %s437
        // Predicated region
        $region37: #{tpu_custom_call.1} parent=35 // pred_check
          %p439 = pneg %p135
        $region38: #{tpu_custom_call.1} parent=35 // pred_check_branch
          %441 = sbr.rel (%p439) target = $region40
        $region39: #{tpu_custom_call.1} parent=35 // pred_region
          %s443 = ssub.s32 128, 128
          %444 = vsyncadd %s435, %s443
          %s445 = smul.addr %s18, 128
          %s446 = scalar_lea.hbm %s4, %s445
          %s448 = sshll.u32 %s438, 4
          %s449 = int_to_ptr.vmem [resolvable:$true] %s448
          %451 = dma.vmem_to_hbm [thread:$0]  %s449, 128, %s446, %s435
        $region40: #{tpu_custom_call.1} parent=35 // pred_fallthru
          _
      $region36: #{tpu_custom_call.1} parent=5 // pred_fallthru
        _
      %p452 = scmp.le.s32.totalorder 2, %s13
      // Predicated region
      $region41: #{tpu_custom_call.1} parent=5 // pred_check
        %p453 = pneg %p452
      $region42: #{tpu_custom_call.1} parent=5 // pred_check_branch
        %455 = sbr.rel (%p453) target = $region44
      $region43: #{tpu_custom_call.1} parent=5 // pred_region
        %s456 = ssub.s32 %s13, 2
        // Predicated region
        $region45: #{tpu_custom_call.1} parent=43 // pred_check
          %p457 = pneg %p141
        $region46: #{tpu_custom_call.1} parent=43 // pred_check_branch
          %459 = sbr.rel (%p457) target = $region48
        $region47: #{tpu_custom_call.1} parent=43 // pred_region
          %s460 = sand.u32 %s126, 1
          %s461 = scalar_lea.sflag [#allocation3], %s460
          %s462 = sand.u32 %s126, 1
          %s463 = smul.addr %s462, 8
          %s464 = scalar_lea.vmem [#allocation2], %s463
          %465 = dma.done %s461, 128
        $region48: #{tpu_custom_call.1} parent=43 // pred_fallthru
          _
      $region44: #{tpu_custom_call.1} parent=5 // pred_fallthru
        _
    $region6: #{tpu_custom_call.1} parent=1 // loop_footer
      %s17 = sadd.s32 1, %s13
    $region7: #{tpu_custom_call.1} parent=1 // loop_footer_branch
      %12 = sbr.rel target = $region3
    $region8: #{tpu_custom_call.1} parent=1 // loop_exit
      _
    %466 = vsyncpa [#allocation3], 1
    %s467 = scalar_lea.sflag [#allocation3], 1
    %468 = vsyncpa %s467, 1

</llo_original>
